<compile_context>
chip_gen: v6e
topology: v6e:2x2x1
jax: 0.10.0
libtpu: 0.0.40
codegen_flags: <defaults>
</compile_context>

<pallas_src>
import functools

import jax
import jax.numpy as jnp
from jax.experimental import pallas as pl
from jax.experimental.pallas import tpu as pltpu


def _round_up(v, m):
    return (v + m - 1) // m * m


def channel_attention_kernel(x_ref, w1t_ref, w2t_ref, o_ref, sum_sc, max_sc,
                             *, s_valid, tile_s, inv_hw, need_mask):
    # x_ref : (TB, C8, tile_s)   w1t_ref : (C8, Cr)   w2t_ref : (Cr, C8)
    # o_ref : (TB, C8)           sum_sc/max_sc : (TB, C8) f32 scratch
    k = pl.program_id(1)  # spatial reduction axis (innermost)

    @pl.when(k == 0)
    def _init():
        sum_sc[...] = jnp.zeros_like(sum_sc)
        max_sc[...] = jnp.full_like(max_sc, -jnp.inf)

    x = x_ref[...]  # native dtype; no whole-tile upcast needed for the max path

    if need_mask:
        # Only the last spatial tile contains padding; mask it for the max.
        pos = jax.lax.broadcasted_iota(jnp.int32, x.shape, 2) + k * tile_s
        x_for_max = jnp.where(pos < s_valid, x,
                              jnp.asarray(-jnp.inf, dtype=x.dtype))
    else:
        x_for_max = x

    # Per-tile partial reductions; spatial padding is zero so the sum is exact.
    tile_sum = jnp.sum(x.astype(jnp.float32), axis=-1)   # (TB, C8)
    tile_max = jnp.max(x_for_max, axis=-1)               # (TB, C8)

    sum_sc[...] = sum_sc[...] + tile_sum
    max_sc[...] = jnp.maximum(max_sc[...], tile_max.astype(jnp.float32))

    @pl.when(k == pl.num_programs(1) - 1)
    def _finalize():
        avg = sum_sc[...] * inv_hw          # divide by H*W once, in the epilogue
        mx = max_sc[...]
        w1t = w1t_ref[...].astype(jnp.float32)   # (C8, Cr)
        w2t = w2t_ref[...].astype(jnp.float32)   # (Cr, C8)

        def mlp(v):
            h = jnp.dot(v, w1t, preferred_element_type=jnp.float32)
            h = jnp.maximum(h, 0.0)
            return jnp.dot(h, w2t, preferred_element_type=jnp.float32)

        o_ref[...] = jax.nn.sigmoid(mlp(avg) + mlp(mx)).astype(o_ref.dtype)


def channel_attention(x, w_fc1, w_fc2, *, spatial_tile=None):
    """x: (B, C, H, W) NCHW; w_fc1: (Cr, C); w_fc2: (C, Cr). Returns (B, C, 1, 1)."""
    B, C, H, W = x.shape
    Cr = w_fc1.shape[0]
    S = H * W
    itemsize = x.dtype.itemsize

    # --- padding / tiling decisions (all static) ---------------------------
    C8 = _round_up(C, 8)                       # sublane alignment for x blocks
    if B % 8 == 0:
        tile_b, Bp = min(B, 8), B              # batch blocks of 8 -> megacore
    elif B < 8:
        tile_b, Bp = B, B                      # single small batch block
    else:
        tile_b, Bp = 8, _round_up(B, 8)

    s_min_pad = _round_up(S, 128)
    if spatial_tile is None:
        # Target ~8 MiB per x block so double-buffering stays well inside
        # v7x's 64 MiB VMEM (and trivially inside v5e/v6e's 128 MiB).
        target_bytes = 8 * 1024 * 1024
        spatial_tile = max(128, (target_bytes // max(1, tile_b * C8 * itemsize))
                           // 128 * 128)
    tile_s = max(128, min(spatial_tile, s_min_pad) // 128 * 128)
    S_pad = _round_up(S, tile_s)

    # --- host-side layout prep ---------------------------------------------
    x3 = x.reshape(B, C, S)
    if (Bp, C8, S_pad) != (B, C, S):
        x3 = jnp.pad(x3, ((0, Bp - B), (0, C8 - C), (0, S_pad - S)))

    w1t = w_fc1.T                              # (C, Cr)
    w2t = w_fc2.T                              # (Cr, C)
    if C8 != C:
        w1t = jnp.pad(w1t, ((0, C8 - C), (0, 0)))
        w2t = jnp.pad(w2t, ((0, 0), (0, C8 - C)))

    grid = (Bp // tile_b, S_pad // tile_s)

    kernel = functools.partial(
        channel_attention_kernel,
        s_valid=S, tile_s=tile_s, inv_hw=1.0 / float(S),
        need_mask=(S_pad != S),
    )

    cost = pl.CostEstimate(
        flops=2 * Bp * C8 * S_pad + 8 * Bp * C8 * Cr,
        transcendentals=Bp * C8,
        bytes_accessed=(Bp * C8 * S_pad * itemsize
                        + 2 * C8 * Cr * w1t.dtype.itemsize
                        + Bp * C8 * itemsize),
    )

    out = pl.pallas_call(
        kernel,
        out_shape=jax.ShapeDtypeStruct((Bp, C8), x.dtype),
        grid_spec=pltpu.PrefetchScalarGridSpec(
            num_scalar_prefetch=0,
            grid=grid,
            in_specs=[
                pl.BlockSpec((tile_b, C8, tile_s), lambda b, k: (b, 0, k)),
                pl.BlockSpec((C8, Cr), lambda b, k: (0, 0)),   # resident weights
                pl.BlockSpec((Cr, C8), lambda b, k: (0, 0)),   # resident weights
            ],
            out_specs=pl.BlockSpec((tile_b, C8), lambda b, k: (b, 0)),
            scratch_shapes=[
                pltpu.VMEM((tile_b, C8), jnp.float32),   # running sum
                pltpu.VMEM((tile_b, C8), jnp.float32),   # running max
            ],
        ),
        compiler_params=pltpu.CompilerParams(
            dimension_semantics=("parallel", "arbitrary"),
            vmem_limit_bytes=48 << 20,
        ),
        cost_estimate=cost,
    )(x3, w1t, w2t)

    return out[:B, :C].reshape(B, C, 1, 1)


def channel_attention_ref(x, w_fc1, w_fc2):
    """Pure-JAX reference mirroring the PyTorch forward."""
    avg = jnp.mean(x, axis=(2, 3))   # (B, C)
    mx = jnp.max(x, axis=(2, 3))     # (B, C)

    def mlp(v):
        h = jnp.maximum(v @ w_fc1.T, 0.0)   # (B, Cr)
        return h @ w_fc2.T                  # (B, C)

    out = mlp(avg) + mlp(mx)
    return jax.nn.sigmoid(out)[:, :, None, None]


if __name__ == "__main__":
    key = jax.random.PRNGKey(0)
    k_x, k_w1, k_w2 = jax.random.split(key, 3)

    # Small shapes consistent with the module: in_planes=64, ratio=16 -> hidden=4.
    B, C, H, W = 2, 64, 16, 16
    ratio = 16
    Cr = C // ratio

    x = jax.random.normal(k_x, (B, C, H, W), dtype=jnp.float32)
    # Deterministic synthetic 1x1-conv weights (bias=False).
    w_fc1 = jax.random.normal(k_w1, (Cr, C), dtype=jnp.float32) * 0.1  # fc1.weight[:, :, 0, 0]
    w_fc2 = jax.random.normal(k_w2, (C, Cr), dtype=jnp.float32) * 0.1  # fc2.weight[:, :, 0, 0]

    out = channel_attention(x, w_fc1, w_fc2)
    out = jax.block_until_ready(out)

    ref = channel_attention_ref(x, w_fc1, w_fc2)
    assert out.shape == (B, C, 1, 1)
    assert jnp.allclose(out, ref, atol=1e-5, rtol=1e-5)

    print("KERNEL_OK")
</pallas_src>

<mosaic_0001>
module attributes {stable_mosaic.version = 11 : i64} {
  func.func @channel_attention_kernel(%arg0: i32, %arg1: i32, %arg2: memref<2x64x256xf32, #tpu.memory_space<vmem>>, %arg3: memref<64x4xf32, #tpu.memory_space<vmem>>, %arg4: memref<4x64xf32, #tpu.memory_space<vmem>>, %arg5: memref<2x64xf32, #tpu.memory_space<vmem>>, %arg6: memref<2x64xf32, #tpu.memory_space<vmem>>, %arg7: memref<2x64xf32, #tpu.memory_space<vmem>>) attributes {dimension_semantics = [#tpu.dimension_semantics<parallel>, #tpu.dimension_semantics<arbitrary>], iteration_bounds = array<i64: 1, 1>, scalar_prefetch = 0 : i64, scratch_operands = 2 : i64, tpu.core_type = #tpu.core_type<tc>, window_params = [{transform_indices = @transform_0, window_bounds = array<i64: 2, 64, 256>}, {pipeline_mode = #tpu.pipeline_mode<synchronous>, transform_indices = @transform_1, window_bounds = array<i64: 64, 4>}, {pipeline_mode = #tpu.pipeline_mode<synchronous>, transform_indices = @transform_2, window_bounds = array<i64: 4, 64>}, {transform_indices = @transform_3, window_bounds = array<i64: 2, 64>}]} {
    %c0_i32 = arith.constant 0 : i32
    %0 = arith.cmpi eq, %arg1, %c0_i32 : i32
    %1 = arith.extui %0 : i1 to i32
    %c0_i32_0 = arith.constant 0 : i32
    %2 = arith.cmpi ne, %1, %c0_i32_0 : i32
    scf.if %2 {
      %cst_14 = arith.constant 0.000000e+00 : f32
      %15 = vector.broadcast %cst_14 : f32 to vector<2x64xf32>
      %c0_15 = arith.constant 0 : index
      %c0_16 = arith.constant 0 : index
      %16 = vector.load %arg6[%c0_15, %c0_16] : memref<2x64xf32, #tpu.memory_space<vmem>>, vector<2x64xf32>
      tpu.vector_store %arg6[%c0_15, %c0_16], %15 {strides = array<i32>} : memref<2x64xf32, #tpu.memory_space<vmem>>, vector<2x64xf32>,
      %cst_17 = arith.constant 0xFF800000 : f32
      %17 = vector.broadcast %cst_17 : f32 to vector<2x64xf32>
      %c0_18 = arith.constant 0 : index
      %c0_19 = arith.constant 0 : index
      %18 = vector.load %arg7[%c0_18, %c0_19] : memref<2x64xf32, #tpu.memory_space<vmem>>, vector<2x64xf32>
      tpu.vector_store %arg7[%c0_18, %c0_19], %17 {strides = array<i32>} : memref<2x64xf32, #tpu.memory_space<vmem>>, vector<2x64xf32>,
    } else {
    }
    %c0 = arith.constant 0 : index
    %c0_1 = arith.constant 0 : index
    %c0_2 = arith.constant 0 : index
    %3 = vector.load %arg2[%c0, %c0_1, %c0_2] : memref<2x64x256xf32, #tpu.memory_space<vmem>>, vector<2x64x256xf32>
    %cst = arith.constant dense<0.000000e+00> : vector<2x64xf32>
    %4 = vector.multi_reduction <add>, %3, %cst [2] : vector<2x64x256xf32> to vector<2x64xf32>
    %cst_3 = arith.constant dense<0xFF800000> : vector<2x64xf32>
    %5 = vector.multi_reduction <maximumf>, %3, %cst_3 [2] : vector<2x64x256xf32> to vector<2x64xf32>
    %c0_4 = arith.constant 0 : index
    %c0_5 = arith.constant 0 : index
    %6 = vector.load %arg6[%c0_4, %c0_5] : memref<2x64xf32, #tpu.memory_space<vmem>>, vector<2x64xf32>
    %7 = arith.addf %6, %4 : vector<2x64xf32>
    %c0_6 = arith.constant 0 : index
    %c0_7 = arith.constant 0 : index
    %8 = vector.load %arg6[%c0_6, %c0_7] : memref<2x64xf32, #tpu.memory_space<vmem>>, vector<2x64xf32>
    tpu.vector_store %arg6[%c0_6, %c0_7], %7 {strides = array<i32>} : memref<2x64xf32, #tpu.memory_space<vmem>>, vector<2x64xf32>,
    %c0_8 = arith.constant 0 : index
    %c0_9 = arith.constant 0 : index
    %9 = vector.load %arg7[%c0_8, %c0_9] : memref<2x64xf32, #tpu.memory_space<vmem>>, vector<2x64xf32>
    %10 = arith.maximumf %9, %5 : vector<2x64xf32>
    %c0_10 = arith.constant 0 : index
    %c0_11 = arith.constant 0 : index
    %11 = vector.load %arg7[%c0_10, %c0_11] : memref<2x64xf32, #tpu.memory_space<vmem>>, vector<2x64xf32>
    tpu.vector_store %arg7[%c0_10, %c0_11], %10 {strides = array<i32>} : memref<2x64xf32, #tpu.memory_space<vmem>>, vector<2x64xf32>,
    %c0_i32_12 = arith.constant 0 : i32
    %12 = arith.cmpi eq, %arg1, %c0_i32_12 : i32
    %13 = arith.extui %12 : i1 to i32
    %c0_i32_13 = arith.constant 0 : i32
    %14 = arith.cmpi ne, %13, %c0_i32_13 : i32
    scf.if %14 {
      %c0_14 = arith.constant 0 : index
      %c0_15 = arith.constant 0 : index
      %15 = vector.load %arg6[%c0_14, %c0_15] : memref<2x64xf32, #tpu.memory_space<vmem>>, vector<2x64xf32>
      %cst_16 = arith.constant 3.906250e-03 : f32
      %16 = vector.broadcast %cst_16 : f32 to vector<2x64xf32>
      %17 = arith.mulf %15, %16 : vector<2x64xf32>
      %c0_17 = arith.constant 0 : index
      %c0_18 = arith.constant 0 : index
      %18 = vector.load %arg7[%c0_17, %c0_18] : memref<2x64xf32, #tpu.memory_space<vmem>>, vector<2x64xf32>
      %c0_19 = arith.constant 0 : index
      %c0_20 = arith.constant 0 : index
      %19 = vector.load %arg3[%c0_19, %c0_20] : memref<64x4xf32, #tpu.memory_space<vmem>>, vector<64x4xf32>
      %c0_21 = arith.constant 0 : index
      %c0_22 = arith.constant 0 : index
      %20 = vector.load %arg4[%c0_21, %c0_22] : memref<4x64xf32, #tpu.memory_space<vmem>>, vector<4x64xf32>
      %cst_23 = arith.constant dense<0.000000e+00> : vector<2x4xf32>
      %21 = tpu.matmul %17, %19, %cst_23 {dimension_numbers = #tpu.dot_dimension_numbers<[1], [0], [0], [1], [0, 0, 1, 1], [], []>} : vector<2x64xf32>, vector<64x4xf32>, vector<2x4xf32> -> vector<2x4xf32>
      %cst_24 = arith.constant 0.000000e+00 : f32
      %22 = vector.broadcast %cst_24 : f32 to vector<2x4xf32>
      %23 = arith.maximumf %21, %22 : vector<2x4xf32>
      %cst_25 = arith.constant dense<0.000000e+00> : vector<2x64xf32>
      %24 = tpu.matmul %23, %20, %cst_25 {dimension_numbers = #tpu.dot_dimension_numbers<[1], [0], [0], [1], [0, 0, 1, 1], [], []>} : vector<2x4xf32>, vector<4x64xf32>, vector<2x64xf32> -> vector<2x64xf32>
      %cst_26 = arith.constant dense<0.000000e+00> : vector<2x4xf32>
      %25 = tpu.matmul %18, %19, %cst_26 {dimension_numbers = #tpu.dot_dimension_numbers<[1], [0], [0], [1], [0, 0, 1, 1], [], []>} : vector<2x64xf32>, vector<64x4xf32>, vector<2x4xf32> -> vector<2x4xf32>
      %cst_27 = arith.constant 0.000000e+00 : f32
      %26 = vector.broadcast %cst_27 : f32 to vector<2x4xf32>
      %27 = arith.maximumf %25, %26 : vector<2x4xf32>
      %cst_28 = arith.constant dense<0.000000e+00> : vector<2x64xf32>
      %28 = tpu.matmul %27, %20, %cst_28 {dimension_numbers = #tpu.dot_dimension_numbers<[1], [0], [0], [1], [0, 0, 1, 1], [], []>} : vector<2x4xf32>, vector<4x64xf32>, vector<2x64xf32> -> vector<2x64xf32>
      %29 = arith.addf %24, %28 : vector<2x64xf32>
      %30 = arith.negf %29 : vector<2x64xf32>
      %31 = math.exp %30 : vector<2x64xf32>
      %cst_29 = arith.constant 1.000000e+00 : f32
      %32 = vector.broadcast %cst_29 : f32 to vector<2x64xf32>
      %33 = arith.addf %32, %31 : vector<2x64xf32>
      %34 = arith.divf %32, %33 : vector<2x64xf32>
      %c0_30 = arith.constant 0 : index
      %c0_31 = arith.constant 0 : index
      %35 = vector.load %arg5[%c0_30, %c0_31] : memref<2x64xf32, #tpu.memory_space<vmem>>, vector<2x64xf32>
      tpu.vector_store %arg5[%c0_30, %c0_31], %34 {strides = array<i32>} : memref<2x64xf32, #tpu.memory_space<vmem>>, vector<2x64xf32>,
    } else {
    }
    return
  }
  func.func @transform_0(%arg0: i32, %arg1: i32) -> (i32, i32, i32) {
    %c0_i32 = arith.constant 0 : i32
    %c0_i32_0 = arith.constant 0 : i32
    return %arg0, %c0_i32, %arg1 : i32, i32, i32
  }
  func.func @transform_1(%arg0: i32, %arg1: i32) -> (i32, i32) {
    %c0_i32 = arith.constant 0 : i32
    %c0_i32_0 = arith.constant 0 : i32
    %c0_i32_1 = arith.constant 0 : i32
    return %c0_i32, %c0_i32_0 : i32, i32
  }
  func.func @transform_2(%arg0: i32, %arg1: i32) -> (i32, i32) {
    %c0_i32 = arith.constant 0 : i32
    %c0_i32_0 = arith.constant 0 : i32
    %c0_i32_1 = arith.constant 0 : i32
    return %c0_i32, %c0_i32_0 : i32, i32
  }
  func.func @transform_3(%arg0: i32, %arg1: i32) -> (i32, i32) {
    %c0_i32 = arith.constant 0 : i32
    %c0_i32_0 = arith.constant 0 : i32
    return %arg0, %c0_i32 : i32, i32
  }
}

</mosaic_0001>

<llo_original>
// kernel: tpu_custom_call.1
$region0: #{tpu_custom_call.1}
  #allocation0 [shape = 'u32[]', space=smem, size = 0x4, offset = 0x4, fixed_abs, tag = 'smem constant byte address 0x4 - core index']
  #allocation1 [shape = 'u32[144,128]{1,0:T(1,128)}', space=vmem, size = 0x12000, scoped, tag = 'internal scratch']
  #allocation2 [shape = 'f32[2,64]{1,0:T(2,128)}', space=vmem, size = 0x400, scoped, tag = 'scratch operand']
  #allocation3 [shape = 'f32[2,64]{1,0:T(2,128)}', space=vmem, size = 0x400, scoped, tag = 'scratch operand']
  %s0 = inlined_call_operand.hbm [shape: f32[2,64,256], index: 0, kind: input, shape index: {}]
  %s1 = inlined_call_operand.vmem [shape: f32[64,4], index: 1, kind: input, shape index: {}]
  %s2 = inlined_call_operand.vmem [shape: f32[4,64], index: 2, kind: input, shape index: {}]
  %s3 = inlined_call_operand.hbm [shape: f32[2,64], index: 3, kind: output, shape index: {}]
  %s4 = sld [smem:[#allocation0]]
  $region34: #{tpu_custom_call.1} parent=0
    _
  %s6 = ssub.s32 1, %s4
  %s7 = scalar_select 0, %s6, %s4
  $region1: #{tpu_custom_call.1} parent=0
    #allocation4 [shape = 'u8[131072]{0}', space=vmem, size = 0x20000, scoped, tag = 'input window, operand 0, single buffered']
    #allocation5 [shape = 's32[1]{0}', space=sflag, size = 0x4, scoped, tag = 'scoped memory for tpu_custom_call.1']
    #allocation6 [shape = 's32[1]{0}', space=sflag, size = 0x4, scoped, tag = 'scoped memory for tpu_custom_call.1']
    #allocation7 [shape = 'u8[1024]{0}', space=vmem, size = 0x400, scoped, tag = 'output window, operand 0, single buffered']
    %8 = vsyncpa [#allocation5], 0
    %9 = vsyncpa [#allocation6], 0
    // Predicated region
    $region2: #{tpu_custom_call.1} parent=1 // pred_check
      _
    $region3: #{tpu_custom_call.1} parent=1 // pred_check_branch
      %11 = sbr.rel (0) target = $region5
    $region4: #{tpu_custom_call.1} parent=1 // pred_region
      %s13 = ssub.s32 4096, 4096
      %14 = vsyncadd [#allocation5], %s13
      %s15 = sshll.u32 [#allocation4], 4
      %s16 = int_to_ptr.vmem [resolvable:$true] %s15
      %21 = dma.hbm_to_vmem [thread:$0]  %s0, 4096, %s16, [#allocation5], 256, 256, 16
    $region5: #{tpu_custom_call.1} parent=1 // pred_fallthru
      _
    // Predicated region
    $region6: #{tpu_custom_call.1} parent=1 // pred_check
      _
    $region7: #{tpu_custom_call.1} parent=1 // pred_check_branch
      %23 = sbr.rel (0) target = $region9
    $region8: #{tpu_custom_call.1} parent=1 // pred_region
      _
    $region9: #{tpu_custom_call.1} parent=1 // pred_fallthru
      _
    // Predicated region
    $region10: #{tpu_custom_call.1} parent=1 // pred_check
      _
    $region11: #{tpu_custom_call.1} parent=1 // pred_check_branch
      %25 = sbr.rel (0) target = $region13
    $region12: #{tpu_custom_call.1} parent=1 // pred_region
      _
    $region13: #{tpu_custom_call.1} parent=1 // pred_fallthru
      _
    // Predicated region
    $region14: #{tpu_custom_call.1} parent=1 // pred_check
      _
    $region15: #{tpu_custom_call.1} parent=1 // pred_check_branch
      %27 = sbr.rel (0) target = $region17
    $region16: #{tpu_custom_call.1} parent=1 // pred_region
      %28 = dma.done [#allocation5], 4096
    $region17: #{tpu_custom_call.1} parent=1 // pred_fallthru
      _
    %p29 = scmp.eq.s32.totalorder 0, 0
    // Predicated region
    $region18: #{tpu_custom_call.1} parent=1 // pred_check
      %p30 = pneg %p29
    $region19: #{tpu_custom_call.1} parent=1 // pred_check_branch
      %32 = sbr.rel (%p30) target = $region21
    $region20: #{tpu_custom_call.1} parent=1 // pred_region
      %vm33 = vcmask 517120
      %34 = vst.msk [vmem:[#allocation2] sm:$0x3] %vm33, 0.0
      %35 = vst.msk [vmem:[#allocation3] sm:$0x3] %vm33, -inf
    $region21: #{tpu_custom_call.1} parent=1 // pred_fallthru
      _
    %v36 = vld [vmem:[#allocation4] sm:$0xff]
    %v37 = vld [vmem:[#allocation4 + $0x8] sm:$0xff]
    %v38 = vld [vmem:[#allocation4 + $0x10] sm:$0xff]
    %v39 = vld [vmem:[#allocation4 + $0x18] sm:$0xff]
    %v40 = vld [vmem:[#allocation4 + $0x20] sm:$0xff]
    %v41 = vld [vmem:[#allocation4 + $0x28] sm:$0xff]
    %v42 = vld [vmem:[#allocation4 + $0x30] sm:$0xff]
    %v43 = vld [vmem:[#allocation4 + $0x38] sm:$0xff]
    %v44 = vld [vmem:[#allocation4 + $0x40] sm:$0xff]
    %v45 = vld [vmem:[#allocation4 + $0x48] sm:$0xff]
    %v46 = vld [vmem:[#allocation4 + $0x50] sm:$0xff]
    %v47 = vld [vmem:[#allocation4 + $0x58] sm:$0xff]
    %v48 = vld [vmem:[#allocation4 + $0x60] sm:$0xff]
    %v49 = vld [vmem:[#allocation4 + $0x68] sm:$0xff]
    %v50 = vld [vmem:[#allocation4 + $0x70] sm:$0xff]
    %v51 = vld [vmem:[#allocation4 + $0x78] sm:$0xff]
    %v52 = vld [vmem:[#allocation4 + $0x80] sm:$0xff]
    %v53 = vld [vmem:[#allocation4 + $0x88] sm:$0xff]
    %v54 = vld [vmem:[#allocation4 + $0x90] sm:$0xff]
    %v55 = vld [vmem:[#allocation4 + $0x98] sm:$0xff]
    %v56 = vld [vmem:[#allocation4 + $0xa0] sm:$0xff]
    %v57 = vld [vmem:[#allocation4 + $0xa8] sm:$0xff]
    %v58 = vld [vmem:[#allocation4 + $0xb0] sm:$0xff]
    %v59 = vld [vmem:[#allocation4 + $0xb8] sm:$0xff]
    %v60 = vld [vmem:[#allocation4 + $0xc0] sm:$0xff]
    %v61 = vld [vmem:[#allocation4 + $0xc8] sm:$0xff]
    %v62 = vld [vmem:[#allocation4 + $0xd0] sm:$0xff]
    %v63 = vld [vmem:[#allocation4 + $0xd8] sm:$0xff]
    %v64 = vld [vmem:[#allocation4 + $0xe0] sm:$0xff]
    %v65 = vld [vmem:[#allocation4 + $0xe8] sm:$0xff]
    %v66 = vld [vmem:[#allocation4 + $0xf0] sm:$0xff]
    %v67 = vld [vmem:[#allocation4 + $0xf8] sm:$0xff]
    %v68 = vadd.f32 %v36, %v37
    %69 = vadd.xlane.f32.xlu0 %v68
    %v70 = vpop.xlane.xlu0 %69
    %v71 = vadd.f32 %v38, %v39
    %72 = vadd.xlane.f32.xlu0 %v71
    %v73 = vpop.xlane.xlu0 %72
    %v74 = vadd.f32 %v40, %v41
    %75 = vadd.xlane.f32.xlu0 %v74
    %v76 = vpop.xlane.xlu0 %75
    %v77 = vadd.f32 %v42, %v43
    %78 = vadd.xlane.f32.xlu0 %v77
    %v79 = vpop.xlane.xlu0 %78
    %v80 = vadd.f32 %v44, %v45
    %81 = vadd.xlane.f32.xlu0 %v80
    %v82 = vpop.xlane.xlu0 %81
    %v83 = vadd.f32 %v46, %v47
    %84 = vadd.xlane.f32.xlu0 %v83
    %v85 = vpop.xlane.xlu0 %84
    %v86 = vadd.f32 %v48, %v49
    %87 = vadd.xlane.f32.xlu0 %v86
    %v88 = vpop.xlane.xlu0 %87
    %v89 = vadd.f32 %v50, %v51
    %90 = vadd.xlane.f32.xlu0 %v89
    %v91 = vpop.xlane.xlu0 %90
    %v92 = vadd.f32 %v52, %v53
    %93 = vadd.xlane.f32.xlu0 %v92
    %v94 = vpop.xlane.xlu0 %93
    %v95 = vadd.f32 %v54, %v55
    %96 = vadd.xlane.f32.xlu0 %v95
    %v97 = vpop.xlane.xlu0 %96
    %v98 = vadd.f32 %v56, %v57
    %99 = vadd.xlane.f32.xlu0 %v98
    %v100 = vpop.xlane.xlu0 %99
    %v101 = vadd.f32 %v58, %v59
    %102 = vadd.xlane.f32.xlu0 %v101
    %v103 = vpop.xlane.xlu0 %102
    %v104 = vadd.f32 %v60, %v61
    %105 = vadd.xlane.f32.xlu0 %v104
    %v106 = vpop.xlane.xlu0 %105
    %v107 = vadd.f32 %v62, %v63
    %108 = vadd.xlane.f32.xlu0 %v107
    %v109 = vpop.xlane.xlu0 %108
    %v110 = vadd.f32 %v64, %v65
    %111 = vadd.xlane.f32.xlu0 %v110
    %v112 = vpop.xlane.xlu0 %111
    %v113 = vadd.f32 %v66, %v67
    %114 = vadd.xlane.f32.xlu0 %v113
    %v115 = vpop.xlane.xlu0 %114
    %v116 = vmax.f32 %v36, %v37
    %117 = vmax.xlane.f32.xlu0 %v116
    %v118 = vpop.xlane.xlu0 %117
    %v119 = vmax.f32 %v38, %v39
    %120 = vmax.xlane.f32.xlu0 %v119
    %v121 = vpop.xlane.xlu0 %120
    %v122 = vmax.f32 %v40, %v41
    %123 = vmax.xlane.f32.xlu0 %v122
    %v124 = vpop.xlane.xlu0 %123
    %v125 = vmax.f32 %v42, %v43
    %126 = vmax.xlane.f32.xlu0 %v125
    %v127 = vpop.xlane.xlu0 %126
    %v128 = vmax.f32 %v44, %v45
    %129 = vmax.xlane.f32.xlu0 %v128
    %v130 = vpop.xlane.xlu0 %129
    %v131 = vmax.f32 %v46, %v47
    %132 = vmax.xlane.f32.xlu0 %v131
    %v133 = vpop.xlane.xlu0 %132
    %v134 = vmax.f32 %v48, %v49
    %135 = vmax.xlane.f32.xlu0 %v134
    %v136 = vpop.xlane.xlu0 %135
    %v137 = vmax.f32 %v50, %v51
    %138 = vmax.xlane.f32.xlu0 %v137
    %v139 = vpop.xlane.xlu0 %138
    %v140 = vmax.f32 %v52, %v53
    %141 = vmax.xlane.f32.xlu0 %v140
    %v142 = vpop.xlane.xlu0 %141
    %v143 = vmax.f32 %v54, %v55
    %144 = vmax.xlane.f32.xlu0 %v143
    %v145 = vpop.xlane.xlu0 %144
    %v146 = vmax.f32 %v56, %v57
    %147 = vmax.xlane.f32.xlu0 %v146
    %v148 = vpop.xlane.xlu0 %147
    %v149 = vmax.f32 %v58, %v59
    %150 = vmax.xlane.f32.xlu0 %v149
    %v151 = vpop.xlane.xlu0 %150
    %v152 = vmax.f32 %v60, %v61
    %153 = vmax.xlane.f32.xlu0 %v152
    %v154 = vpop.xlane.xlu0 %153
    %v155 = vmax.f32 %v62, %v63
    %156 = vmax.xlane.f32.xlu0 %v155
    %v157 = vpop.xlane.xlu0 %156
    %v158 = vmax.f32 %v64, %v65
    %159 = vmax.xlane.f32.xlu0 %v158
    %v160 = vpop.xlane.xlu0 %159
    %v161 = vmax.f32 %v66, %v67
    %162 = vmax.xlane.f32.xlu0 %v161
    %v163 = vpop.xlane.xlu0 %162
    %v164 = vld [vmem:[#allocation2] sm:$0x3]
    %v181 = vlaneseq
    %v182 = vand.u32 %v181, 127
    %v183 = vlaneseq
    %v184 = vshrl.u32 %v183, 7
    %v185 = vsub.s32 %v182, %v184
    %v186 = vrot.slane %v70, %v185
    %v187 = vadd.s32 %v182, 4294967288
    %v188 = vlaneseq
    %v189 = vshrl.u32 %v188, 7
    %v190 = vsub.s32 %v187, %v189
    %v191 = vrot.slane %v73, %v190
    %vm192 = vcmask 130112
    %v193 = vsel %vm192, %v191, %v186
    %v194 = vadd.s32 %v182, 4294967280
    %v195 = vlaneseq
    %v196 = vshrl.u32 %v195, 7
    %v197 = vsub.s32 %v194, %v196
    %v198 = vrot.slane %v76, %v197
    %vm199 = vcmask 195712
    %v200 = vsel %vm199, %v198, %v193
    %v201 = vadd.s32 %v182, 4294967272
    %v202 = vlaneseq
    %v203 = vshrl.u32 %v202, 7
    %v204 = vsub.s32 %v201, %v203
    %v205 = vrot.slane %v79, %v204
    %vm206 = vcmask 261312
    %v207 = vsel %vm206, %v205, %v200
    %v208 = vadd.s32 %v182, 4294967264
    %v209 = vlaneseq
    %v210 = vshrl.u32 %v209, 7
    %v211 = vsub.s32 %v208, %v210
    %v212 = vrot.slane %v82, %v211
    %vm213 = vcmask 326912
    %v214 = vsel %vm213, %v212, %v207
    %v215 = vadd.s32 %v182, 4294967256
    %v216 = vlaneseq
    %v217 = vshrl.u32 %v216, 7
    %v218 = vsub.s32 %v215, %v217
    %v219 = vrot.slane %v85, %v218
    %vm220 = vcmask 392512
    %v221 = vsel %vm220, %v219, %v214
    %v222 = vadd.s32 %v182, 4294967248
    %v223 = vlaneseq
    %v224 = vshrl.u32 %v223, 7
    %v225 = vsub.s32 %v222, %v224
    %v226 = vrot.slane %v88, %v225
    %vm227 = vcmask 458112
    %v228 = vsel %vm227, %v226, %v221
    %v229 = vadd.s32 %v182, 4294967240
    %v230 = vlaneseq
    %v231 = vshrl.u32 %v230, 7
    %v232 = vsub.s32 %v229, %v231
    %v233 = vrot.slane %v91, %v232
    %vm234 = vcmask 523712
    %v235 = vsel %vm234, %v233, %v228
    %v236 = vlaneseq
    %v237 = vshrl.u32 %v236, 7
    %v238 = vsub.s32 %v182, %v237
    %v239 = vrot.slane %v94, %v238
    %v240 = vlaneseq
    %v241 = vshrl.u32 %v240, 7
    %v242 = vsub.s32 %v187, %v241
    %v243 = vrot.slane %v97, %v242
    %v244 = vsel %vm192, %v243, %v239
    %v245 = vlaneseq
    %v246 = vshrl.u32 %v245, 7
    %v247 = vsub.s32 %v194, %v246
    %v248 = vrot.slane %v100, %v247
    %v249 = vsel %vm199, %v248, %v244
    %v250 = vlaneseq
    %v251 = vshrl.u32 %v250, 7
    %v252 = vsub.s32 %v201, %v251
    %v253 = vrot.slane %v103, %v252
    %v254 = vsel %vm206, %v253, %v249
    %v255 = vlaneseq
    %v256 = vshrl.u32 %v255, 7
    %v257 = vsub.s32 %v208, %v256
    %v258 = vrot.slane %v106, %v257
    %v259 = vsel %vm213, %v258, %v254
    %v260 = vlaneseq
    %v261 = vshrl.u32 %v260, 7
    %v262 = vsub.s32 %v215, %v261
    %v263 = vrot.slane %v109, %v262
    %v264 = vsel %vm220, %v263, %v259
    %v265 = vlaneseq
    %v266 = vshrl.u32 %v265, 7
    %v267 = vsub.s32 %v222, %v266
    %v268 = vrot.slane %v112, %v267
    %v269 = vsel %vm227, %v268, %v264
    %v270 = vlaneseq
    %v271 = vshrl.u32 %v270, 7
    %v272 = vsub.s32 %v229, %v271
    %v273 = vrot.slane %v115, %v272
    %v274 = vsel %vm234, %v273, %v269
    %vm275 = vcmask 1041409
    %v276 = vsel %vm275, %v274, %v235
    %v278 = vadd.f32 %v164, %v276
    %vm279 = vcmask 517120
    %280 = vst.msk [vmem:[#allocation2] sm:$0x3] %vm279, %v278
    %v281 = vld [vmem:[#allocation3] sm:$0x3]
    %v298 = vlaneseq
    %v299 = vshrl.u32 %v298, 7
    %v300 = vsub.s32 %v182, %v299
    %v301 = vrot.slane %v118, %v300
    %v302 = vlaneseq
    %v303 = vshrl.u32 %v302, 7
    %v304 = vsub.s32 %v187, %v303
    %v305 = vrot.slane %v121, %v304
    %v306 = vsel %vm192, %v305, %v301
    %v307 = vlaneseq
    %v308 = vshrl.u32 %v307, 7
    %v309 = vsub.s32 %v194, %v308
    %v310 = vrot.slane %v124, %v309
    %v311 = vsel %vm199, %v310, %v306
    %v312 = vlaneseq
    %v313 = vshrl.u32 %v312, 7
    %v314 = vsub.s32 %v201, %v313
    %v315 = vrot.slane %v127, %v314
    %v316 = vsel %vm206, %v315, %v311
    %v317 = vlaneseq
    %v318 = vshrl.u32 %v317, 7
    %v319 = vsub.s32 %v208, %v318
    %v320 = vrot.slane %v130, %v319
    %v321 = vsel %vm213, %v320, %v316
    %v322 = vlaneseq
    %v323 = vshrl.u32 %v322, 7
    %v324 = vsub.s32 %v215, %v323
    %v325 = vrot.slane %v133, %v324
    %v326 = vsel %vm220, %v325, %v321
    %v327 = vlaneseq
    %v328 = vshrl.u32 %v327, 7
    %v329 = vsub.s32 %v222, %v328
    %v330 = vrot.slane %v136, %v329
    %v331 = vsel %vm227, %v330, %v326
    %v332 = vlaneseq
    %v333 = vshrl.u32 %v332, 7
    %v334 = vsub.s32 %v229, %v333
    %v335 = vrot.slane %v139, %v334
    %v336 = vsel %vm234, %v335, %v331
    %v337 = vlaneseq
    %v338 = vshrl.u32 %v337, 7
    %v339 = vsub.s32 %v182, %v338
    %v340 = vrot.slane %v142, %v339
    %v341 = vlaneseq
    %v342 = vshrl.u32 %v341, 7
    %v343 = vsub.s32 %v187, %v342
    %v344 = vrot.slane %v145, %v343
    %v345 = vsel %vm192, %v344, %v340
    %v346 = vlaneseq
    %v347 = vshrl.u32 %v346, 7
    %v348 = vsub.s32 %v194, %v347
    %v349 = vrot.slane %v148, %v348
    %v350 = vsel %vm199, %v349, %v345
    %v351 = vlaneseq
    %v352 = vshrl.u32 %v351, 7
    %v353 = vsub.s32 %v201, %v352
    %v354 = vrot.slane %v151, %v353
    %v355 = vsel %vm206, %v354, %v350
    %v356 = vlaneseq
    %v357 = vshrl.u32 %v356, 7
    %v358 = vsub.s32 %v208, %v357
    %v359 = vrot.slane %v154, %v358
    %v360 = vsel %vm213, %v359, %v355
    %v361 = vlaneseq
    %v362 = vshrl.u32 %v361, 7
    %v363 = vsub.s32 %v215, %v362
    %v364 = vrot.slane %v157, %v363
    %v365 = vsel %vm220, %v364, %v360
    %v366 = vlaneseq
    %v367 = vshrl.u32 %v366, 7
    %v368 = vsub.s32 %v222, %v367
    %v369 = vrot.slane %v160, %v368
    %v370 = vsel %vm227, %v369, %v365
    %v371 = vlaneseq
    %v372 = vshrl.u32 %v371, 7
    %v373 = vsub.s32 %v229, %v372
    %v374 = vrot.slane %v163, %v373
    %v375 = vsel %vm234, %v374, %v370
    %v376 = vsel %vm275, %v375, %v336
    %v378 = vmax.f32 %v281, %v376
    %379 = vst.msk [vmem:[#allocation3] sm:$0x3] %vm279, %v378
    // Predicated region
    $region22: #{tpu_custom_call.1} parent=1 // pred_check
      %p380 = pneg %p29
    $region23: #{tpu_custom_call.1} parent=1 // pred_check_branch
      %382 = sbr.rel (%p380) target = $region25
    $region24: #{tpu_custom_call.1} parent=1 // pred_region
      %v383 = vld [vmem:[#allocation2] sm:$0x3]
      %v384 = vmul.f32 %v383, 0.00390625
      %v385 = vld [vmem:[#allocation3] sm:$0x3]
      %v386 = vld [vmem:[%s1] sm:$0xff]
      %v387 = vld [vmem:[%s1 + $0x8] sm:$0xff]
      %v388 = vld [vmem:[%s1 + $0x10] sm:$0xff]
      %v389 = vld [vmem:[%s1 + $0x18] sm:$0xff]
      %v390 = vld [vmem:[%s1 + $0x20] sm:$0xff]
      %v391 = vld [vmem:[%s1 + $0x28] sm:$0xff]
      %v392 = vld [vmem:[%s1 + $0x30] sm:$0xff]
      %v393 = vld [vmem:[%s1 + $0x38] sm:$0xff]
      %v394 = vld [vmem:[%s2] sm:$0xf]
      %vm395 = vcmask 523264
      %v397 = vsel %vm395, %v384, 0
      %399 = vmatprep.subr.mxu0 0.0
      %400 = vmatpush1.msra.mxu0 0.0
      %401 = vmatprep.subr.mxu0 0.0
      %402 = vmatpush1.msra.mxu0 0.0
      %403 = vmatprep.subr.mxu0 0.0
      %404 = vmatpush1.msra.mxu0 0.0
      %405 = vmatprep.subr.mxu0 0.0
      %406 = vmatpush1.msra.mxu0 0.0
      %407 = vmatprep.subr.mxu0 0.0
      %408 = vmatpush1.msra.mxu0 0.0
      %409 = vmatprep.subr.mxu0 0.0
      %410 = vmatpush1.msra.mxu0 0.0
      %411 = vmatprep.subr.mxu0 0.0
      %412 = vmatpush1.msra.mxu0 0.0
      %413 = vmatprep.subr.mxu0 0.0
      %414 = vmatpush1.msra.mxu0 0.0
      %415 = vmatprep.subr.mxu0 0.0
      %416 = vmatpush1.msra.mxu0 %v393
      %417 = vmatprep.subr.mxu0 0.0
      %418 = vmatpush1.msra.mxu0 %v392
      %419 = vmatprep.subr.mxu0 0.0
      %420 = vmatpush1.msra.mxu0 %v391
      %421 = vmatprep.subr.mxu0 0.0
      %422 = vmatpush1.msra.mxu0 %v390
      %423 = vmatprep.subr.mxu0 0.0
      %424 = vmatpush1.msra.mxu0 %v389
      %425 = vmatprep.subr.mxu0 0.0
      %426 = vmatpush1.msra.mxu0 %v388
      %427 = vmatprep.subr.mxu0 0.0
      %428 = vmatpush1.msra.mxu0 %v387
      %429 = vmatprep.subr.mxu0 0.0
      %430 = vmatpush1.msra.mxu0 %v386
      %431 = vmatprep.subr.mxu0 0.0
      %432 = vmatpush2.msra.mxu0 0.0
      %433 = vmatprep.subr.mxu0 0.0
      %434 = vmatpush2.msra.mxu0 0.0
      %435 = vmatprep.subr.mxu0 0.0
      %436 = vmatpush2.msra.mxu0 0.0
      %437 = vmatprep.subr.mxu0 0.0
      %438 = vmatpush2.msra.mxu0 0.0
      %439 = vmatprep.subr.mxu0 0.0
      %440 = vmatpush2.msra.mxu0 0.0
      %441 = vmatprep.subr.mxu0 0.0
      %442 = vmatpush2.msra.mxu0 0.0
      %443 = vmatprep.subr.mxu0 0.0
      %444 = vmatpush2.msra.mxu0 0.0
      %445 = vmatprep.subr.mxu0 0.0
      %446 = vmatpush2.msra.mxu0 0.0
      %447 = vmatprep.subr.mxu0 0.0
      %448 = vmatpush2.msra.mxu0 0.0
      %449 = vmatprep.subr.mxu0 0.0
      %450 = vmatpush2.msra.mxu0 0.0
      %451 = vmatprep.subr.mxu0 0.0
      %452 = vmatpush2.msra.mxu0 0.0
      %453 = vmatprep.subr.mxu0 0.0
      %454 = vmatpush2.msra.mxu0 0.0
      %455 = vmatprep.subr.mxu0 0.0
      %456 = vmatpush2.msra.mxu0 0.0
      %457 = vmatprep.subr.mxu0 0.0
      %458 = vmatpush2.msra.mxu0 0.0
      %459 = vmatprep.subr.mxu0 0.0
      %460 = vmatpush2.msra.mxu0 0.0
      %461 = vmatprep.subr.mxu0 0.0
      %462 = vmatpush2.msra.mxu0 0.0
      %463 = vmatprep.mubr.f32.mxu0 0.0
      %464 = vmatmul.mubr.f32.gmra.mxu0 %v397
      %v465 = vpop.f32.mrf.mxu0
      %v466 = vadd.f32 0.0, %v465
      %v467 = vpop.f32.mrf.mxu0
      %468 = vdwg.mxu0
      %v469 = vmax.f32 %v466, 0.0
      %v471 = vsel %vm395, %v385, 0
      %473 = vmatprep.subr.mxu0 0.0
      %474 = vmatpush1.msra.mxu0 0.0
      %475 = vmatprep.subr.mxu0 0.0
      %476 = vmatpush1.msra.mxu0 0.0
      %477 = vmatprep.subr.mxu0 0.0
      %478 = vmatpush1.msra.mxu0 0.0
      %479 = vmatprep.subr.mxu0 0.0
      %480 = vmatpush1.msra.mxu0 0.0
      %481 = vmatprep.subr.mxu0 0.0
      %482 = vmatpush1.msra.mxu0 0.0
      %483 = vmatprep.subr.mxu0 0.0
      %484 = vmatpush1.msra.mxu0 0.0
      %485 = vmatprep.subr.mxu0 0.0
      %486 = vmatpush1.msra.mxu0 0.0
      %487 = vmatprep.subr.mxu0 0.0
      %488 = vmatpush1.msra.mxu0 0.0
      %489 = vmatprep.subr.mxu0 0.0
      %490 = vmatpush1.msra.mxu0 %v393
      %491 = vmatprep.subr.mxu0 0.0
      %492 = vmatpush1.msra.mxu0 %v392
      %493 = vmatprep.subr.mxu0 0.0
      %494 = vmatpush1.msra.mxu0 %v391
      %495 = vmatprep.subr.mxu0 0.0
      %496 = vmatpush1.msra.mxu0 %v390
      %497 = vmatprep.subr.mxu0 0.0
      %498 = vmatpush1.msra.mxu0 %v389
      %499 = vmatprep.subr.mxu0 0.0
      %500 = vmatpush1.msra.mxu0 %v388
      %501 = vmatprep.subr.mxu0 0.0
      %502 = vmatpush1.msra.mxu0 %v387
      %503 = vmatprep.subr.mxu0 0.0
      %504 = vmatpush1.msra.mxu0 %v386
      %505 = vmatprep.subr.mxu0 0.0
      %506 = vmatpush2.msra.mxu0 0.0
      %507 = vmatprep.subr.mxu0 0.0
      %508 = vmatpush2.msra.mxu0 0.0
      %509 = vmatprep.subr.mxu0 0.0
      %510 = vmatpush2.msra.mxu0 0.0
      %511 = vmatprep.subr.mxu0 0.0
      %512 = vmatpush2.msra.mxu0 0.0
      %513 = vmatprep.subr.mxu0 0.0
      %514 = vmatpush2.msra.mxu0 0.0
      %515 = vmatprep.subr.mxu0 0.0
      %516 = vmatpush2.msra.mxu0 0.0
      %517 = vmatprep.subr.mxu0 0.0
      %518 = vmatpush2.msra.mxu0 0.0
      %519 = vmatprep.subr.mxu0 0.0
      %520 = vmatpush2.msra.mxu0 0.0
      %521 = vmatprep.subr.mxu0 0.0
      %522 = vmatpush2.msra.mxu0 0.0
      %523 = vmatprep.subr.mxu0 0.0
      %524 = vmatpush2.msra.mxu0 0.0
      %525 = vmatprep.subr.mxu0 0.0
      %526 = vmatpush2.msra.mxu0 0.0
      %527 = vmatprep.subr.mxu0 0.0
      %528 = vmatpush2.msra.mxu0 0.0
      %529 = vmatprep.subr.mxu0 0.0
      %530 = vmatpush2.msra.mxu0 0.0
      %531 = vmatprep.subr.mxu0 0.0
      %532 = vmatpush2.msra.mxu0 0.0
      %533 = vmatprep.subr.mxu0 0.0
      %534 = vmatpush2.msra.mxu0 0.0
      %535 = vmatprep.subr.mxu0 0.0
      %536 = vmatpush2.msra.mxu0 0.0
      %537 = vmatprep.mubr.f32.mxu0 0.0
      %538 = vmatmul.mubr.f32.gmra.mxu0 %v471
      %v539 = vpop.f32.mrf.mxu0
      %v540 = vadd.f32 0.0, %v539
      %v541 = vpop.f32.mrf.mxu0
      %542 = vdwg.mxu0
      %v543 = vmax.f32 %v540, 0.0
      %vm544 = vcmask 31744
      %v546 = vsel %vm544, %v543, 0
      %vm548 = vcmask 1043456
      %v550 = vsel %vm548, %v394, 0
      %552 = vmatprep.subr.mxu0 0.0
      %553 = vmatpush1.msra.mxu0 0.0
      %554 = vmatprep.subr.mxu0 0.0
      %555 = vmatpush1.msra.mxu0 0.0
      %556 = vmatprep.subr.mxu0 0.0
      %557 = vmatpush1.msra.mxu0 0.0
      %558 = vmatprep.subr.mxu0 0.0
      %559 = vmatpush1.msra.mxu0 0.0
      %560 = vmatprep.subr.mxu0 0.0
      %561 = vmatpush1.msra.mxu0 0.0
      %562 = vmatprep.subr.mxu0 0.0
      %563 = vmatpush1.msra.mxu0 0.0
      %564 = vmatprep.subr.mxu0 0.0
      %565 = vmatpush1.msra.mxu0 0.0
      %566 = vmatprep.subr.mxu0 0.0
      %567 = vmatpush1.msra.mxu0 0.0
      %568 = vmatprep.subr.mxu0 0.0
      %569 = vmatpush1.msra.mxu0 0.0
      %570 = vmatprep.subr.mxu0 0.0
      %571 = vmatpush1.msra.mxu0 0.0
      %572 = vmatprep.subr.mxu0 0.0
      %573 = vmatpush1.msra.mxu0 0.0
      %574 = vmatprep.subr.mxu0 0.0
      %575 = vmatpush1.msra.mxu0 0.0
      %576 = vmatprep.subr.mxu0 0.0
      %577 = vmatpush1.msra.mxu0 0.0
      %578 = vmatprep.subr.mxu0 0.0
      %579 = vmatpush1.msra.mxu0 0.0
      %580 = vmatprep.subr.mxu0 0.0
      %581 = vmatpush1.msra.mxu0 0.0
      %582 = vmatprep.subr.mxu0 0.0
      %583 = vmatpush1.msra.mxu0 %v550
      %584 = vmatprep.subr.mxu0 0.0
      %585 = vmatpush2.msra.mxu0 0.0
      %586 = vmatprep.subr.mxu0 0.0
      %587 = vmatpush2.msra.mxu0 0.0
      %588 = vmatprep.subr.mxu0 0.0
      %589 = vmatpush2.msra.mxu0 0.0
      %590 = vmatprep.subr.mxu0 0.0
      %591 = vmatpush2.msra.mxu0 0.0
      %592 = vmatprep.subr.mxu0 0.0
      %593 = vmatpush2.msra.mxu0 0.0
      %594 = vmatprep.subr.mxu0 0.0
      %595 = vmatpush2.msra.mxu0 0.0
      %596 = vmatprep.subr.mxu0 0.0
      %597 = vmatpush2.msra.mxu0 0.0
      %598 = vmatprep.subr.mxu0 0.0
      %599 = vmatpush2.msra.mxu0 0.0
      %600 = vmatprep.subr.mxu0 0.0
      %601 = vmatpush2.msra.mxu0 0.0
      %602 = vmatprep.subr.mxu0 0.0
      %603 = vmatpush2.msra.mxu0 0.0
      %604 = vmatprep.subr.mxu0 0.0
      %605 = vmatpush2.msra.mxu0 0.0
      %606 = vmatprep.subr.mxu0 0.0
      %607 = vmatpush2.msra.mxu0 0.0
      %608 = vmatprep.subr.mxu0 0.0
      %609 = vmatpush2.msra.mxu0 0.0
      %610 = vmatprep.subr.mxu0 0.0
      %611 = vmatpush2.msra.mxu0 0.0
      %612 = vmatprep.subr.mxu0 0.0
      %613 = vmatpush2.msra.mxu0 0.0
      %614 = vmatprep.subr.mxu0 0.0
      %615 = vmatpush2.msra.mxu0 0.0
      %616 = vmatprep.mubr.f32.mxu0 0.0
      %617 = vmatmul.mubr.f32.gmra.mxu0 %v546
      %v618 = vpop.f32.mrf.mxu0
      %v619 = vadd.f32 0.0, %v618
      %v620 = vpop.f32.mrf.mxu0
      %621 = vdwg.mxu0
      %v623 = vsel %vm544, %v469, 0
      %625 = vmatprep.subr.mxu0 0.0
      %626 = vmatpush1.msra.mxu0 0.0
      %627 = vmatprep.subr.mxu0 0.0
      %628 = vmatpush1.msra.mxu0 0.0
      %629 = vmatprep.subr.mxu0 0.0
      %630 = vmatpush1.msra.mxu0 0.0
      %631 = vmatprep.subr.mxu0 0.0
      %632 = vmatpush1.msra.mxu0 0.0
      %633 = vmatprep.subr.mxu0 0.0
      %634 = vmatpush1.msra.mxu0 0.0
      %635 = vmatprep.subr.mxu0 0.0
      %636 = vmatpush1.msra.mxu0 0.0
      %637 = vmatprep.subr.mxu0 0.0
      %638 = vmatpush1.msra.mxu0 0.0
      %639 = vmatprep.subr.mxu0 0.0
      %640 = vmatpush1.msra.mxu0 0.0
      %641 = vmatprep.subr.mxu0 0.0
      %642 = vmatpush1.msra.mxu0 0.0
      %643 = vmatprep.subr.mxu0 0.0
      %644 = vmatpush1.msra.mxu0 0.0
      %645 = vmatprep.subr.mxu0 0.0
      %646 = vmatpush1.msra.mxu0 0.0
      %647 = vmatprep.subr.mxu0 0.0
      %648 = vmatpush1.msra.mxu0 0.0
      %649 = vmatprep.subr.mxu0 0.0
      %650 = vmatpush1.msra.mxu0 0.0
      %651 = vmatprep.subr.mxu0 0.0
      %652 = vmatpush1.msra.mxu0 0.0
      %653 = vmatprep.subr.mxu0 0.0
      %654 = vmatpush1.msra.mxu0 0.0
      %655 = vmatprep.subr.mxu0 0.0
      %656 = vmatpush1.msra.mxu0 %v550
      %657 = vmatprep.subr.mxu0 0.0
      %658 = vmatpush2.msra.mxu0 0.0
      %659 = vmatprep.subr.mxu0 0.0
      %660 = vmatpush2.msra.mxu0 0.0
      %661 = vmatprep.subr.mxu0 0.0
      %662 = vmatpush2.msra.mxu0 0.0
      %663 = vmatprep.subr.mxu0 0.0
      %664 = vmatpush2.msra.mxu0 0.0
      %665 = vmatprep.subr.mxu0 0.0
      %666 = vmatpush2.msra.mxu0 0.0
      %667 = vmatprep.subr.mxu0 0.0
      %668 = vmatpush2.msra.mxu0 0.0
      %669 = vmatprep.subr.mxu0 0.0
      %670 = vmatpush2.msra.mxu0 0.0
      %671 = vmatprep.subr.mxu0 0.0
      %672 = vmatpush2.msra.mxu0 0.0
      %673 = vmatprep.subr.mxu0 0.0
      %674 = vmatpush2.msra.mxu0 0.0
      %675 = vmatprep.subr.mxu0 0.0
      %676 = vmatpush2.msra.mxu0 0.0
      %677 = vmatprep.subr.mxu0 0.0
      %678 = vmatpush2.msra.mxu0 0.0
      %679 = vmatprep.subr.mxu0 0.0
      %680 = vmatpush2.msra.mxu0 0.0
      %681 = vmatprep.subr.mxu0 0.0
      %682 = vmatpush2.msra.mxu0 0.0
      %683 = vmatprep.subr.mxu0 0.0
      %684 = vmatpush2.msra.mxu0 0.0
      %685 = vmatprep.subr.mxu0 0.0
      %686 = vmatpush2.msra.mxu0 0.0
      %687 = vmatprep.subr.mxu0 0.0
      %688 = vmatpush2.msra.mxu0 0.0
      %689 = vmatprep.mubr.f32.mxu0 0.0
      %690 = vmatmul.mubr.f32.gmra.mxu0 %v623
      %v691 = vpop.f32.mrf.mxu0
      %v692 = vadd.f32 %v619, %v691
      %v693 = vpop.f32.mrf.mxu0
      %694 = vdwg.mxu0
      %v695 = vxor.u32 %v692, 2147483648
      %v696 = vmul.f32 %v695, 1.442695
      %v697 = vpow.pop %v696
      %v698 = vadd.f32 %v697, 1.0
      %v699 = vrcp.pop %v698
      %v700 = vmul.f32 1.0, %v699
      %701 = vst.msk [vmem:[#allocation7] sm:$0x3] %vm279, %v700
    $region25: #{tpu_custom_call.1} parent=1 // pred_fallthru
      _
    // Predicated region
    $region26: #{tpu_custom_call.1} parent=1 // pred_check
      _
    $region27: #{tpu_custom_call.1} parent=1 // pred_check_branch
      %703 = sbr.rel (0) target = $region29
    $region28: #{tpu_custom_call.1} parent=1 // pred_region
      %s705 = ssub.s32 32, 32
      %706 = vsyncadd [#allocation6], %s705
      %s708 = sshll.u32 [#allocation7], 4
      %s709 = int_to_ptr.vmem [resolvable:$true] %s708
      %711 = dma.vmem_to_hbm [thread:$0]  %s709, 32, %s3, [#allocation6]
    $region29: #{tpu_custom_call.1} parent=1 // pred_fallthru
      _
    // Predicated region
    $region30: #{tpu_custom_call.1} parent=1 // pred_check
      _
    $region31: #{tpu_custom_call.1} parent=1 // pred_check_branch
      %713 = sbr.rel (0) target = $region33
    $region32: #{tpu_custom_call.1} parent=1 // pred_region
      %714 = dma.done [#allocation6], 32
    $region33: #{tpu_custom_call.1} parent=1 // pred_fallthru
      _
    %715 = vsyncpa [#allocation5], 1
    %716 = vsyncpa [#allocation6], 1

</llo_original>
